<compile_context>
chip_gen: v7x
topology: tpu7x:2x2x1
jax: 0.10.0
libtpu: 0.0.40
codegen_flags: <defaults>
</compile_context>

<pallas_src>
import jax
import jax.numpy as jnp
from jax.experimental import pallas as pl
from jax.experimental.pallas import tpu as pltpu


def _inference_kernel(x_ref, w1_ref, b1_ref, w2_ref, b2_ref, loc_ref, scale_ref):
    """Two-head linear; softplus only on the scale head.

    x_ref:     (TM, Din)   input tile
    w1_ref:    (Din, Dout) locations weights   (resident across grid steps)
    b1_ref:    (1,  Dout)  locations bias
    w2_ref:    (Din, Dout) scales weights
    b2_ref:    (1,  Dout)  scales bias
    loc_ref:   (TM, Dout)  locations output tile
    scale_ref: (TM, Dout)  softplus(scales) output tile
    """
    x = x_ref[...]

    # Head 1: locations -- no transcendentals touch this head.
    loc = jnp.dot(x, w1_ref[...], preferred_element_type=jnp.float32) + b1_ref[...]
    loc_ref[...] = loc.astype(loc_ref.dtype)

    # Head 2: scales = softplus(x @ w2 + b2).  Numerically stable form, matches
    # torch.nn.Softplus(beta=1, threshold=20) within f32:
    #   softplus(z) = max(z, 0) + log1p(exp(-|z|))
    z = jnp.dot(x, w2_ref[...], preferred_element_type=jnp.float32) + b2_ref[...]
    sp = jnp.maximum(z, 0.0) + jnp.log1p(jnp.exp(-jnp.abs(z)))
    scale_ref[...] = sp.astype(scale_ref.dtype)


def prepare_params(w1, b1, w2, b2, dtype=None):
    """Build kernel-ready parameters ONCE at init time (not per call).

    w*: [Din, Dout] (transposed vs. torch Linear.weight), b*: [Dout].
    Optionally cast to bf16; the kernel accumulates the matmuls in f32 either
    way and keeps the softplus math in f32.
    """
    def cvt(a):
        return a if dtype is None else a.astype(dtype)

    return (cvt(w1), cvt(b1).reshape(1, -1), cvt(w2), cvt(b2).reshape(1, -1))


def _choose_tm(M, Din, Dout, itemsize, tm_max):
    """Row-tile size: fits a conservative VMEM budget (safe under v5e's 16 MiB
    scoped default), amortizes per-step overhead, and yields >=2 parallel grid
    steps for large M so v7x's two TensorCores both get work."""
    vmem_budget = 12 * 1024 * 1024
    # double-buffered x tile + two output tiles per row (weights are tiny/resident)
    per_row = 2 * (Din + 2 * Dout) * itemsize
    tm_cap = max(8, min(tm_max, (vmem_budget // per_row) // 8 * 8))
    if M > tm_cap:
        return tm_cap
    if M >= 1024:
        # Single tile would leave one v7x TensorCore idle; split into two tiles.
        # Perf-neutral on v5e/v6e (one TC).
        return ((pl.cdiv(M, 2) + 7) // 8) * 8
    return M


def inference_net(x2d, params, *, tm_max=2048, min_rows_for_pallas=256):
    """x2d: [M, Din]; params from prepare_params(). Returns (locations, scales),
    each [M, Dout], in the params' compute dtype."""
    w1, b1, w2, b2 = params
    M, Din = x2d.shape
    Dout = w1.shape[1]
    compute_dtype = w1.dtype
    if x2d.dtype != compute_dtype:
        x2d = x2d.astype(compute_dtype)

    # Small-M guard: launch/pipeline overhead dominates below a few hundred
    # rows -- let XLA fuse the tiny GEMMs instead.
    if M < min_rows_for_pallas:
        loc = x2d @ w1 + b1[0]
        scale = jax.nn.softplus((x2d @ w2 + b2[0]).astype(jnp.float32))
        return loc, scale.astype(compute_dtype)

    tm = _choose_tm(M, Din, Dout, jnp.dtype(compute_dtype).itemsize, tm_max)
    grid = (pl.cdiv(M, tm),)

    loc, scale = pl.pallas_call(
        _inference_kernel,
        out_shape=(
            jax.ShapeDtypeStruct((M, Dout), compute_dtype),
            jax.ShapeDtypeStruct((M, Dout), compute_dtype),
        ),
        grid=grid,
        in_specs=[
            pl.BlockSpec((tm, Din), lambda i: (i, 0)),     # x tiles (pipelined)
            pl.BlockSpec((Din, Dout), lambda i: (0, 0)),   # w1 (resident)
            pl.BlockSpec((1, Dout), lambda i: (0, 0)),     # b1 (resident)
            pl.BlockSpec((Din, Dout), lambda i: (0, 0)),   # w2 (resident)
            pl.BlockSpec((1, Dout), lambda i: (0, 0)),     # b2 (resident)
        ],
        out_specs=(
            pl.BlockSpec((tm, Dout), lambda i: (i, 0)),
            pl.BlockSpec((tm, Dout), lambda i: (i, 0)),
        ),
        compiler_params=pltpu.CompilerParams(
            dimension_semantics=("parallel",),
            vmem_limit_bytes=32 * 1024 * 1024,
        ),
    )(x2d, w1, b1, w2, b2)
    return loc, scale


if __name__ == "__main__":
    # Small shapes consistent with the module:
    # embeddings [batch=2, seq=8, in_features=32] -> locations/scales [2, 8, 32]
    batch, seq, in_features, out_features = 2, 8, 32, 32

    key = jax.random.PRNGKey(0)
    kx, kw1, kb1, kw2, kb2 = jax.random.split(key, 5)

    x = jax.random.normal(kx, (batch, seq, in_features), dtype=jnp.float32)

    # torch Linear stores weight [out, in]; here weights are kept transposed
    # ([in, out]) so the kernel computes y = x @ W + b.
    bound = 1.0 / jnp.sqrt(in_features)
    w1 = jax.random.uniform(kw1, (in_features, out_features), jnp.float32, -bound, bound)
    b1 = jax.random.uniform(kb1, (out_features,), jnp.float32, -bound, bound)
    w2 = jax.random.uniform(kw2, (in_features, out_features), jnp.float32, -bound, bound)
    b2 = jax.random.uniform(kb2, (out_features,), jnp.float32, -bound, bound)

    params_f32 = prepare_params(w1, b1, w2, b2)   # built once, reused across calls

    # --- demo shape through the Pallas path (guard disabled so the kernel
    #     itself is exercised at the small shape) -----------------------------
    x2d = x.reshape(batch * seq, in_features)
    loc2d, scale2d = inference_net(x2d, params_f32, min_rows_for_pallas=0)
    locations = loc2d.reshape(batch, seq, out_features)
    scales = scale2d.reshape(batch, seq, out_features)
    jax.block_until_ready((locations, scales))

    loc_ref = x2d @ w1 + b1
    sc_ref = jax.nn.softplus(x2d @ w2 + b2)
    assert jnp.allclose(loc2d, loc_ref, atol=1e-5), "locations mismatch"
    assert jnp.allclose(scale2d, sc_ref, atol=1e-5), "scales mismatch"
    assert float(scales.min()) > 0.0, "softplus output must be positive"

    # --- small-M fallback path (default guard -> plain jnp) ------------------
    loc_s, scale_s = inference_net(x2d, params_f32)
    assert jnp.allclose(loc_s, loc_ref, atol=1e-5), "fallback locations mismatch"
    assert jnp.allclose(scale_s, sc_ref, atol=1e-5), "fallback scales mismatch"

    # --- large M: 2-step parallel grid (shards across v7x TensorCores) -------
    xl = jax.random.normal(kx, (2048, in_features), dtype=jnp.float32)
    loc_l, scale_l = inference_net(xl, params_f32)
    jax.block_until_ready((loc_l, scale_l))
    assert jnp.allclose(loc_l, xl @ w1 + b1, atol=1e-4), "tiled locations mismatch"
    assert jnp.allclose(scale_l, jax.nn.softplus(xl @ w2 + b2), atol=1e-4), "tiled scales mismatch"

    # --- ragged last tile (M % tm != 0) exercises clipped writeback ----------
    xr = jax.random.normal(kw2, (1536, in_features), dtype=jnp.float32)
    loc_r, scale_r = inference_net(xr, params_f32, tm_max=1024)   # grid=2, last tile 512 rows
    jax.block_until_ready((loc_r, scale_r))
    assert jnp.allclose(loc_r, xr @ w1 + b1, atol=1e-4), "ragged locations mismatch"
    assert jnp.allclose(scale_r, jax.nn.softplus(xr @ w2 + b2), atol=1e-4), "ragged scales mismatch"

    # --- bf16 params/activations (f32 MXU accumulation, f32 softplus) --------
    params_bf16 = prepare_params(w1, b1, w2, b2, dtype=jnp.bfloat16)
    loc_h, scale_h = inference_net(xl, params_bf16)
    jax.block_until_ready((loc_h, scale_h))
    assert jnp.allclose(loc_h.astype(jnp.float32), xl @ w1 + b1,
                        atol=5e-2, rtol=5e-2), "bf16 locations mismatch"
    assert jnp.allclose(scale_h.astype(jnp.float32), jax.nn.softplus(xl @ w2 + b2),
                        atol=5e-2, rtol=5e-2), "bf16 scales mismatch"

    print("KERNEL_OK")
</pallas_src>

<mosaic_0001>
module attributes {stable_mosaic.version = 11 : i64} {
  func.func @_inference_kernel(%arg0: i32, %arg1: memref<16x32xf32, #tpu.memory_space<vmem>>, %arg2: memref<32x32xf32, #tpu.memory_space<vmem>>, %arg3: memref<1x32xf32, #tpu.memory_space<vmem>>, %arg4: memref<32x32xf32, #tpu.memory_space<vmem>>, %arg5: memref<1x32xf32, #tpu.memory_space<vmem>>, %arg6: memref<16x32xf32, #tpu.memory_space<vmem>>, %arg7: memref<16x32xf32, #tpu.memory_space<vmem>>) attributes {dimension_semantics = [#tpu.dimension_semantics<parallel>], iteration_bounds = array<i64: 1>, scalar_prefetch = 0 : i64, scratch_operands = 0 : i64, tpu.core_type = #tpu.core_type<tc>, window_params = [{transform_indices = @transform_0, window_bounds = array<i64: 16, 32>}, {pipeline_mode = #tpu.pipeline_mode<synchronous>, transform_indices = @transform_1, window_bounds = array<i64: 32, 32>}, {pipeline_mode = #tpu.pipeline_mode<synchronous>, transform_indices = @transform_2, window_bounds = array<i64: 1, 32>}, {pipeline_mode = #tpu.pipeline_mode<synchronous>, transform_indices = @transform_3, window_bounds = array<i64: 32, 32>}, {pipeline_mode = #tpu.pipeline_mode<synchronous>, transform_indices = @transform_4, window_bounds = array<i64: 1, 32>}, {transform_indices = @transform_5, window_bounds = array<i64: 16, 32>}, {transform_indices = @transform_6, window_bounds = array<i64: 16, 32>}]} {
    %c0 = arith.constant 0 : index
    %c0_0 = arith.constant 0 : index
    %0 = vector.load %arg1[%c0, %c0_0] : memref<16x32xf32, #tpu.memory_space<vmem>>, vector<16x32xf32>
    %c0_1 = arith.constant 0 : index
    %c0_2 = arith.constant 0 : index
    %1 = vector.load %arg2[%c0_1, %c0_2] : memref<32x32xf32, #tpu.memory_space<vmem>>, vector<32x32xf32>
    %cst = arith.constant dense<0.000000e+00> : vector<16x32xf32>
    %2 = tpu.matmul %0, %1, %cst {dimension_numbers = #tpu.dot_dimension_numbers<[1], [0], [0], [1], [0, 0, 1, 1], [], []>} : vector<16x32xf32>, vector<32x32xf32>, vector<16x32xf32> -> vector<16x32xf32>
    %c0_3 = arith.constant 0 : index
    %c0_4 = arith.constant 0 : index
    %3 = vector.load %arg3[%c0_3, %c0_4] : memref<1x32xf32, #tpu.memory_space<vmem>>, vector<1x32xf32>
    %4 = vector.broadcast %3 : vector<1x32xf32> to vector<16x32xf32>
    %5 = arith.addf %2, %4 : vector<16x32xf32>
    %c0_5 = arith.constant 0 : index
    %c0_6 = arith.constant 0 : index
    %6 = vector.load %arg6[%c0_5, %c0_6] : memref<16x32xf32, #tpu.memory_space<vmem>>, vector<16x32xf32>
    tpu.vector_store %arg6[%c0_5, %c0_6], %5 {strides = array<i32>} : memref<16x32xf32, #tpu.memory_space<vmem>>, vector<16x32xf32>,
    %c0_7 = arith.constant 0 : index
    %c0_8 = arith.constant 0 : index
    %7 = vector.load %arg4[%c0_7, %c0_8] : memref<32x32xf32, #tpu.memory_space<vmem>>, vector<32x32xf32>
    %cst_9 = arith.constant dense<0.000000e+00> : vector<16x32xf32>
    %8 = tpu.matmul %0, %7, %cst_9 {dimension_numbers = #tpu.dot_dimension_numbers<[1], [0], [0], [1], [0, 0, 1, 1], [], []>} : vector<16x32xf32>, vector<32x32xf32>, vector<16x32xf32> -> vector<16x32xf32>
    %c0_10 = arith.constant 0 : index
    %c0_11 = arith.constant 0 : index
    %9 = vector.load %arg5[%c0_10, %c0_11] : memref<1x32xf32, #tpu.memory_space<vmem>>, vector<1x32xf32>
    %10 = vector.broadcast %9 : vector<1x32xf32> to vector<16x32xf32>
    %11 = arith.addf %8, %10 : vector<16x32xf32>
    %cst_12 = arith.constant 0.000000e+00 : f32
    %12 = vector.broadcast %cst_12 : f32 to vector<16x32xf32>
    %13 = arith.maximumf %11, %12 : vector<16x32xf32>
    %14 = math.absf %11 : vector<16x32xf32>
    %cst_13 = arith.constant 0.000000e+00 : f32
    %15 = vector.broadcast %cst_13 : f32 to vector<16x32xf32>
    %16 = arith.subf %15, %14 : vector<16x32xf32>
    %17 = math.exp %16 : vector<16x32xf32>
    %18 = math.log1p %17 : vector<16x32xf32>
    %19 = arith.addf %13, %18 : vector<16x32xf32>
    %c0_14 = arith.constant 0 : index
    %c0_15 = arith.constant 0 : index
    %20 = vector.load %arg7[%c0_14, %c0_15] : memref<16x32xf32, #tpu.memory_space<vmem>>, vector<16x32xf32>
    tpu.vector_store %arg7[%c0_14, %c0_15], %19 {strides = array<i32>} : memref<16x32xf32, #tpu.memory_space<vmem>>, vector<16x32xf32>,
    return
  }
  func.func @transform_0(%arg0: i32) -> (i32, i32) {
    %c0_i32 = arith.constant 0 : i32
    %c0_i32_0 = arith.constant 0 : i32
    return %arg0, %c0_i32 : i32, i32
  }
  func.func @transform_1(%arg0: i32) -> (i32, i32) {
    %c0_i32 = arith.constant 0 : i32
    %c0_i32_0 = arith.constant 0 : i32
    %c0_i32_1 = arith.constant 0 : i32
    return %c0_i32, %c0_i32_0 : i32, i32
  }
  func.func @transform_2(%arg0: i32) -> (i32, i32) {
    %c0_i32 = arith.constant 0 : i32
    %c0_i32_0 = arith.constant 0 : i32
    %c0_i32_1 = arith.constant 0 : i32
    return %c0_i32, %c0_i32_0 : i32, i32
  }
  func.func @transform_3(%arg0: i32) -> (i32, i32) {
    %c0_i32 = arith.constant 0 : i32
    %c0_i32_0 = arith.constant 0 : i32
    %c0_i32_1 = arith.constant 0 : i32
    return %c0_i32, %c0_i32_0 : i32, i32
  }
  func.func @transform_4(%arg0: i32) -> (i32, i32) {
    %c0_i32 = arith.constant 0 : i32
    %c0_i32_0 = arith.constant 0 : i32
    %c0_i32_1 = arith.constant 0 : i32
    return %c0_i32, %c0_i32_0 : i32, i32
  }
  func.func @transform_5(%arg0: i32) -> (i32, i32) {
    %c0_i32 = arith.constant 0 : i32
    %c0_i32_0 = arith.constant 0 : i32
    return %arg0, %c0_i32 : i32, i32
  }
  func.func @transform_6(%arg0: i32) -> (i32, i32) {
    %c0_i32 = arith.constant 0 : i32
    %c0_i32_0 = arith.constant 0 : i32
    return %arg0, %c0_i32 : i32, i32
  }
}

</mosaic_0001>

<llo_original>
// kernel: tpu_custom_call.1
$region0: #{tpu_custom_call.1}
  #allocation0 [shape = 'u32[]', space=smem, size = 0x4, offset = 0x4, fixed_abs, tag = 'smem constant byte address 0x4 - core index']
  #allocation1 [shape = 'u32[144,128]{1,0:T(1,128)}', space=vmem, size = 0x12000, scoped, tag = 'internal scratch']
  %s0 = inlined_call_operand.hbm [shape: f32[16,32], index: 0, kind: input, shape index: {}]
  %s1 = inlined_call_operand.hbm [shape: f32[32,32], index: 1, kind: input, shape index: {}]
  %s2 = inlined_call_operand.vmem [shape: f32[1,32], index: 2, kind: input, shape index: {}]
  %s3 = inlined_call_operand.hbm [shape: f32[32,32], index: 3, kind: input, shape index: {}]
  %s4 = inlined_call_operand.vmem [shape: f32[1,32], index: 4, kind: input, shape index: {}]
  %s5 = inlined_call_operand.hbm [shape: f32[16,32], index: 5, kind: output, shape index: {0}]
  %s6 = inlined_call_operand.hbm [shape: f32[16,32], index: 6, kind: output, shape index: {1}]
  %7 = xla_tuple %s5, %s6
  %s8 = sld [smem:[#allocation0]]
  $region50: #{tpu_custom_call.1} parent=0
    _
  %s10 = ssub.s32 1, %s8
  %s11 = scalar_select 0, %s10, %s8
  $region1: #{tpu_custom_call.1} parent=0
    #allocation2 [shape = 'u8[8192]{0}', space=vmem, size = 0x2000, scoped, tag = 'input window, operand 0, single buffered']
    #allocation3 [shape = 's32[1]{0}', space=sflag, size = 0x4, scoped, tag = 'scoped memory for tpu_custom_call.1']
    #allocation4 [shape = 's32[1]{0}', space=sflag, size = 0x4, scoped, tag = 'scoped memory for tpu_custom_call.1']
    #allocation5 [shape = 'u8[16384]{0}', space=vmem, size = 0x4000, scoped, tag = 'input window, operand 1, single buffered']
    #allocation6 [shape = 's32[1]{0}', space=sflag, size = 0x4, scoped, tag = 'scoped memory for tpu_custom_call.1']
    #allocation7 [shape = 'u8[16384]{0}', space=vmem, size = 0x4000, scoped, tag = 'input window, operand 3, single buffered']
    #allocation8 [shape = 'u8[8192]{0}', space=vmem, size = 0x2000, scoped, tag = 'output window, operand 0, single buffered']
    #allocation9 [shape = 'u8[8192]{0}', space=vmem, size = 0x2000, scoped, tag = 'output window, operand 1, single buffered']
    #allocation10 [shape = 's32[1]{0}', space=sflag, size = 0x4, scoped, tag = 'scoped memory for tpu_custom_call.1']
    %12 = vsyncpa [#allocation3], 0
    %13 = vsyncpa [#allocation6], 0
    %14 = vsyncpa [#allocation4], 0
    %15 = vsyncpa [#allocation10], 0
    // Predicated region
    $region2: #{tpu_custom_call.1} parent=1 // pred_check
      _
    $region3: #{tpu_custom_call.1} parent=1 // pred_check_branch
      %17 = sbr.rel (0) target = $region5
    $region4: #{tpu_custom_call.1} parent=1 // pred_region
      %s19 = ssub.s32 256, 256
      %20 = vsyncadd [#allocation3], %s19
      %s21 = sshll.u32 [#allocation2], 4
      %s22 = int_to_ptr.vmem [resolvable:$true] %s21
      %27 = dma.hbm_to_vmem [thread:$0]  %s0, 256, %s22, [#allocation3], 128, 128, 8
    $region5: #{tpu_custom_call.1} parent=1 // pred_fallthru
      _
    // Predicated region
    $region6: #{tpu_custom_call.1} parent=1 // pred_check
      _
    $region7: #{tpu_custom_call.1} parent=1 // pred_check_branch
      %29 = sbr.rel (0) target = $region9
    $region8: #{tpu_custom_call.1} parent=1 // pred_region
      %s31 = ssub.s32 512, 512
      %32 = vsyncadd [#allocation6], %s31
      %s33 = sshll.u32 [#allocation5], 4
      %s34 = int_to_ptr.vmem [resolvable:$true] %s33
      %39 = dma.hbm_to_vmem [thread:$0]  %s1, 512, %s34, [#allocation6], 128, 128, 8
    $region9: #{tpu_custom_call.1} parent=1 // pred_fallthru
      _
    // Predicated region
    $region10: #{tpu_custom_call.1} parent=1 // pred_check
      _
    $region11: #{tpu_custom_call.1} parent=1 // pred_check_branch
      %41 = sbr.rel (0) target = $region13
    $region12: #{tpu_custom_call.1} parent=1 // pred_region
      _
    $region13: #{tpu_custom_call.1} parent=1 // pred_fallthru
      _
    // Predicated region
    $region14: #{tpu_custom_call.1} parent=1 // pred_check
      _
    $region15: #{tpu_custom_call.1} parent=1 // pred_check_branch
      %43 = sbr.rel (0) target = $region17
    $region16: #{tpu_custom_call.1} parent=1 // pred_region
      %s45 = ssub.s32 512, 512
      %46 = vsyncadd [#allocation6], %s45
      %s47 = sshll.u32 [#allocation7], 4
      %s48 = int_to_ptr.vmem [resolvable:$true] %s47
      %53 = dma.hbm_to_vmem [thread:$0]  %s3, 512, %s48, [#allocation6], 128, 128, 8
    $region17: #{tpu_custom_call.1} parent=1 // pred_fallthru
      _
    // Predicated region
    $region18: #{tpu_custom_call.1} parent=1 // pred_check
      _
    $region19: #{tpu_custom_call.1} parent=1 // pred_check_branch
      %55 = sbr.rel (0) target = $region21
    $region20: #{tpu_custom_call.1} parent=1 // pred_region
      _
    $region21: #{tpu_custom_call.1} parent=1 // pred_fallthru
      _
    // Predicated region
    $region22: #{tpu_custom_call.1} parent=1 // pred_check
      _
    $region23: #{tpu_custom_call.1} parent=1 // pred_check_branch
      %57 = sbr.rel (0) target = $region25
    $region24: #{tpu_custom_call.1} parent=1 // pred_region
      %58 = dma.done [#allocation3], 256
    $region25: #{tpu_custom_call.1} parent=1 // pred_fallthru
      _
    // Predicated region
    $region26: #{tpu_custom_call.1} parent=1 // pred_check
      _
    $region27: #{tpu_custom_call.1} parent=1 // pred_check_branch
      %60 = sbr.rel (0) target = $region29
    $region28: #{tpu_custom_call.1} parent=1 // pred_region
      %61 = dma.done [#allocation6], 512
    $region29: #{tpu_custom_call.1} parent=1 // pred_fallthru
      _
    // Predicated region
    $region30: #{tpu_custom_call.1} parent=1 // pred_check
      _
    $region31: #{tpu_custom_call.1} parent=1 // pred_check_branch
      %63 = sbr.rel (0) target = $region33
    $region32: #{tpu_custom_call.1} parent=1 // pred_region
      %64 = dma.done [#allocation6], 512
    $region33: #{tpu_custom_call.1} parent=1 // pred_fallthru
      _
    %v65 = vld [vmem:[#allocation2] sm:$0xff]
    %v66 = vld [vmem:[#allocation2 + $0x8] sm:$0xff]
    %v67 = vld [vmem:[#allocation5] sm:$0xff]
    %v68 = vld [vmem:[#allocation5 + $0x8] sm:$0xff]
    %v69 = vld [vmem:[#allocation5 + $0x10] sm:$0xff]
    %v70 = vld [vmem:[#allocation5 + $0x18] sm:$0xff]
    %v71 = vld [vmem:[%s2] sm:$0x1]
    %v73 = vlaneseq
    %v74 = vshrl.u32 %v73, 7
    %v75 = vsub.s32 0, %v74
    %v76 = vrot.slane %v71, %v75
    %vm78 = vcmask 261120
    %v80 = vsel %vm78, %v65, 0
    %v83 = vsel %vm78, %v66, 0
    %85 = vmatprep.subr.mxu0 0.0
    %86 = vmatpush1.msra.mxu0 %v67
    %87 = vmatprep.subr.mxu0 0.0
    %88 = vmatpush1.msra.mxu0 %v68
    %89 = vmatprep.subr.mxu0 0.0
    %90 = vmatpush1.msra.mxu0 %v69
    %91 = vmatprep.subr.mxu0 0.0
    %92 = vmatpush1.msra.mxu0 %v70
    %93 = vmatprep.subr.mxu0 0.0
    %94 = vmatpush1.msra.mxu0 0.0
    %95 = vmatprep.subr.mxu0 0.0
    %96 = vmatpush1.msra.mxu0 0.0
    %97 = vmatprep.subr.mxu0 0.0
    %98 = vmatpush1.msra.mxu0 0.0
    %99 = vmatprep.subr.mxu0 0.0
    %100 = vmatpush1.msra.mxu0 0.0
    %101 = vmatprep.subr.mxu0 0.0
    %102 = vmatpush1.msra.mxu0 0.0
    %103 = vmatprep.subr.mxu0 0.0
    %104 = vmatpush1.msra.mxu0 0.0
    %105 = vmatprep.subr.mxu0 0.0
    %106 = vmatpush1.msra.mxu0 0.0
    %107 = vmatprep.subr.mxu0 0.0
    %108 = vmatpush1.msra.mxu0 0.0
    %109 = vmatprep.subr.mxu0 0.0
    %110 = vmatpush1.msra.mxu0 0.0
    %111 = vmatprep.subr.mxu0 0.0
    %112 = vmatpush1.msra.mxu0 0.0
    %113 = vmatprep.subr.mxu0 0.0
    %114 = vmatpush1.msra.mxu0 0.0
    %115 = vmatprep.subr.mxu0 0.0
    %116 = vmatpush1.msra.mxu0 0.0
    %117 = vmatprep.subr.mxu0 0.0
    %118 = vmatpush1.msra.mxu0 0.0
    %119 = vmatprep.subr.mxu0 0.0
    %120 = vmatpush1.msra.mxu0 0.0
    %121 = vmatprep.subr.mxu0 0.0
    %122 = vmatpush1.msra.mxu0 0.0
    %123 = vmatprep.subr.mxu0 0.0
    %124 = vmatpush1.msra.mxu0 0.0
    %125 = vmatprep.subr.mxu0 0.0
    %126 = vmatpush1.msra.mxu0 0.0
    %127 = vmatprep.subr.mxu0 0.0
    %128 = vmatpush1.msra.mxu0 0.0
    %129 = vmatprep.subr.mxu0 0.0
    %130 = vmatpush1.msra.mxu0 0.0
    %131 = vmatprep.subr.mxu0 0.0
    %132 = vmatpush1.msra.mxu0 0.0
    %133 = vmatprep.subr.mxu0 0.0
    %134 = vmatpush1.msra.mxu0 0.0
    %135 = vmatprep.subr.mxu0 0.0
    %136 = vmatpush1.msra.mxu0 0.0
    %137 = vmatprep.subr.mxu0 0.0
    %138 = vmatpush1.msra.mxu0 0.0
    %139 = vmatprep.subr.mxu0 0.0
    %140 = vmatpush1.msra.mxu0 0.0
    %141 = vmatprep.subr.mxu0 0.0
    %142 = vmatpush1.msra.mxu0 0.0
    %143 = vmatprep.subr.mxu0 0.0
    %144 = vmatpush1.msra.mxu0 0.0
    %145 = vmatprep.subr.mxu0 0.0
    %146 = vmatpush1.msra.mxu0 0.0
    %147 = vmatprep.subr.mxu0 0.0
    %148 = vmatpush1.msra.mxu0 0.0
    %149 = vmatprep.mubr.f32.mxu0 0.0
    %150 = vmatmul.mubr.f32.gmra.mrb[0].mxu0 %v80
    %v151 = vpop.f32.mrb[0].mxu0
    %v152 = vadd.f32 %v76, %v151
    %v153 = vpop.f32.mrb[0].mxu0
    %154 = vmatprep.mubr.f32.mxu0 0.0
    %155 = vmatmul.mubr.f32.gmra.mrb[0].mxu0 %v83
    %v156 = vpop.f32.mrb[0].mxu0
    %v157 = vadd.f32 %v76, %v156
    %v158 = vpop.f32.mrb[0].mxu0
    %159 = vdwg.mxu0
    %160 = vst.msk [vmem:[#allocation8] sm:$0xff] %vm78, %v152
    %161 = vst.msk [vmem:[#allocation8 + $0x8] sm:$0xff] %vm78, %v157
    %v162 = vld [vmem:[#allocation7] sm:$0xff]
    %v163 = vld [vmem:[#allocation7 + $0x8] sm:$0xff]
    %v164 = vld [vmem:[#allocation7 + $0x10] sm:$0xff]
    %v165 = vld [vmem:[#allocation7 + $0x18] sm:$0xff]
    %v166 = vld [vmem:[%s4] sm:$0x1]
    %v168 = vlaneseq
    %v169 = vshrl.u32 %v168, 7
    %v170 = vsub.s32 0, %v169
    %v171 = vrot.slane %v166, %v170
    %173 = vmatprep.subr.mxu0 0.0
    %174 = vmatpush1.msra.mxu0 %v162
    %175 = vmatprep.subr.mxu0 0.0
    %176 = vmatpush1.msra.mxu0 %v163
    %177 = vmatprep.subr.mxu0 0.0
    %178 = vmatpush1.msra.mxu0 %v164
    %179 = vmatprep.subr.mxu0 0.0
    %180 = vmatpush1.msra.mxu0 %v165
    %181 = vmatprep.subr.mxu0 0.0
    %182 = vmatpush1.msra.mxu0 0.0
    %183 = vmatprep.subr.mxu0 0.0
    %184 = vmatpush1.msra.mxu0 0.0
    %185 = vmatprep.subr.mxu0 0.0
    %186 = vmatpush1.msra.mxu0 0.0
    %187 = vmatprep.subr.mxu0 0.0
    %188 = vmatpush1.msra.mxu0 0.0
    %189 = vmatprep.subr.mxu0 0.0
    %190 = vmatpush1.msra.mxu0 0.0
    %191 = vmatprep.subr.mxu0 0.0
    %192 = vmatpush1.msra.mxu0 0.0
    %193 = vmatprep.subr.mxu0 0.0
    %194 = vmatpush1.msra.mxu0 0.0
    %195 = vmatprep.subr.mxu0 0.0
    %196 = vmatpush1.msra.mxu0 0.0
    %197 = vmatprep.subr.mxu0 0.0
    %198 = vmatpush1.msra.mxu0 0.0
    %199 = vmatprep.subr.mxu0 0.0
    %200 = vmatpush1.msra.mxu0 0.0
    %201 = vmatprep.subr.mxu0 0.0
    %202 = vmatpush1.msra.mxu0 0.0
    %203 = vmatprep.subr.mxu0 0.0
    %204 = vmatpush1.msra.mxu0 0.0
    %205 = vmatprep.subr.mxu0 0.0
    %206 = vmatpush1.msra.mxu0 0.0
    %207 = vmatprep.subr.mxu0 0.0
    %208 = vmatpush1.msra.mxu0 0.0
    %209 = vmatprep.subr.mxu0 0.0
    %210 = vmatpush1.msra.mxu0 0.0
    %211 = vmatprep.subr.mxu0 0.0
    %212 = vmatpush1.msra.mxu0 0.0
    %213 = vmatprep.subr.mxu0 0.0
    %214 = vmatpush1.msra.mxu0 0.0
    %215 = vmatprep.subr.mxu0 0.0
    %216 = vmatpush1.msra.mxu0 0.0
    %217 = vmatprep.subr.mxu0 0.0
    %218 = vmatpush1.msra.mxu0 0.0
    %219 = vmatprep.subr.mxu0 0.0
    %220 = vmatpush1.msra.mxu0 0.0
    %221 = vmatprep.subr.mxu0 0.0
    %222 = vmatpush1.msra.mxu0 0.0
    %223 = vmatprep.subr.mxu0 0.0
    %224 = vmatpush1.msra.mxu0 0.0
    %225 = vmatprep.subr.mxu0 0.0
    %226 = vmatpush1.msra.mxu0 0.0
    %227 = vmatprep.subr.mxu0 0.0
    %228 = vmatpush1.msra.mxu0 0.0
    %229 = vmatprep.subr.mxu0 0.0
    %230 = vmatpush1.msra.mxu0 0.0
    %231 = vmatprep.subr.mxu0 0.0
    %232 = vmatpush1.msra.mxu0 0.0
    %233 = vmatprep.subr.mxu0 0.0
    %234 = vmatpush1.msra.mxu0 0.0
    %235 = vmatprep.subr.mxu0 0.0
    %236 = vmatpush1.msra.mxu0 0.0
    %237 = vmatprep.mubr.f32.mxu0 0.0
    %238 = vmatmul.mubr.f32.gmra.mrb[0].mxu0 %v80
    %v239 = vpop.f32.mrb[0].mxu0
    %v240 = vadd.f32 %v171, %v239
    %v241 = vpop.f32.mrb[0].mxu0
    %242 = vmatprep.mubr.f32.mxu0 0.0
    %243 = vmatmul.mubr.f32.gmra.mrb[0].mxu0 %v83
    %v244 = vpop.f32.mrb[0].mxu0
    %v245 = vadd.f32 %v171, %v244
    %v246 = vpop.f32.mrb[0].mxu0
    %247 = vdwg.mxu0
    %v248 = vmax.f32 %v240, 0.0
    %v249 = vmax.f32 %v245, 0.0
    %v250 = vand.u32 2147483647, %v240
    %v251 = vand.u32 2147483647, %v245
    %v252 = vsub.f32 0.0, %v250
    %v253 = vsub.f32 0.0, %v251
    %v254 = vmul.f32 %v252, 1.442695
    %v255 = vpow.pop %v254
    %v256 = vmul.f32 %v253, 1.442695
    %v257 = vpow.pop %v256
    %v258 = vadd.f32 %v255, 1.0
    %v259 = vlog2.pop %v258
    %v260 = vmul.f32 %v259, 0.6931472
    %v261 = vmul.f32 -0.5, %v255
    %v262 = vadd.f32 %v261, 1.0
    %v263 = vmul.f32 %v262, %v255
    %v264 = vand.u32 2147483647, %v255
    %vm265 = vcmp.lt.f32.partialorder %v264, 0.0004427343
    %v266 = vsel %vm265, %v263, %v260
    %v267 = vadd.f32 %v257, 1.0
    %v268 = vlog2.pop %v267
    %v269 = vmul.f32 %v268, 0.6931472
    %v270 = vmul.f32 -0.5, %v257
    %v271 = vadd.f32 %v270, 1.0
    %v272 = vmul.f32 %v271, %v257
    %v273 = vand.u32 2147483647, %v257
    %vm274 = vcmp.lt.f32.partialorder %v273, 0.0004427343
    %v275 = vsel %vm274, %v272, %v269
    %v276 = vadd.f32 %v248, %v266
    %v277 = vadd.f32 %v249, %v275
    %278 = vst.msk [vmem:[#allocation9] sm:$0xff] %vm78, %v276
    %279 = vst.msk [vmem:[#allocation9 + $0x8] sm:$0xff] %vm78, %v277
    // Predicated region
    $region34: #{tpu_custom_call.1} parent=1 // pred_check
      _
    $region35: #{tpu_custom_call.1} parent=1 // pred_check_branch
      %281 = sbr.rel (0) target = $region37
    $region36: #{tpu_custom_call.1} parent=1 // pred_region
      %s283 = ssub.s32 256, 256
      %284 = vsyncadd [#allocation4], %s283
      %s285 = sshll.u32 [#allocation8], 4
      %s286 = int_to_ptr.vmem [resolvable:$true] %s285
      %291 = dma.vmem_to_hbm [thread:$0]  %s286, 256, %s5, [#allocation4], 128, 128, 8
    $region37: #{tpu_custom_call.1} parent=1 // pred_fallthru
      _
    // Predicated region
    $region38: #{tpu_custom_call.1} parent=1 // pred_check
      _
    $region39: #{tpu_custom_call.1} parent=1 // pred_check_branch
      %293 = sbr.rel (0) target = $region41
    $region40: #{tpu_custom_call.1} parent=1 // pred_region
      %s295 = ssub.s32 256, 256
      %296 = vsyncadd [#allocation10], %s295
      %s297 = sshll.u32 [#allocation9], 4
      %s298 = int_to_ptr.vmem [resolvable:$true] %s297
      %303 = dma.vmem_to_hbm [thread:$0]  %s298, 256, %s6, [#allocation10], 128, 128, 8
    $region41: #{tpu_custom_call.1} parent=1 // pred_fallthru
      _
    // Predicated region
    $region42: #{tpu_custom_call.1} parent=1 // pred_check
      _
    $region43: #{tpu_custom_call.1} parent=1 // pred_check_branch
      %305 = sbr.rel (0) target = $region45
    $region44: #{tpu_custom_call.1} parent=1 // pred_region
      %306 = dma.done [#allocation4], 256
    $region45: #{tpu_custom_call.1} parent=1 // pred_fallthru
      _
    // Predicated region
    $region46: #{tpu_custom_call.1} parent=1 // pred_check
      _
    $region47: #{tpu_custom_call.1} parent=1 // pred_check_branch
      %308 = sbr.rel (0) target = $region49
    $region48: #{tpu_custom_call.1} parent=1 // pred_region
      %309 = dma.done [#allocation10], 256
    $region49: #{tpu_custom_call.1} parent=1 // pred_fallthru
      _
    %310 = vsyncpa [#allocation3], 1
    %311 = vsyncpa [#allocation6], 1
    %312 = vsyncpa [#allocation4], 1
    %313 = vsyncpa [#allocation10], 1

</llo_original>
